<compile_context>
chip_gen: v6e
topology: v6e:2x2x1
jax: 0.10.0
libtpu: 0.0.40
codegen_flags: <defaults>
</compile_context>

<pallas_src>
import functools

import jax
import jax.numpy as jnp
from jax.experimental import pallas as pl
from jax.experimental.pallas import tpu as pltpu


def _round_up(x, m):
    return (x + m - 1) // m * m


# ----------------------------------------------------------------------------
# Kernels
# ----------------------------------------------------------------------------
def cdae_encoder_kernel(inv_keep, x_ref, w_ref, bias_emb_ref, h_ref, acc_ref):
    """h = relu((x @ W_enc) * inv_keep + (b_enc + user_emb)), reduced over item blocks."""
    k = pl.program_id(1)

    @pl.when(k == 0)
    def _():
        acc_ref[...] = jnp.zeros_like(acc_ref)

    acc_ref[...] += jnp.dot(
        x_ref[...], w_ref[...], preferred_element_type=jnp.float32
    )

    @pl.when(k == pl.num_programs(1) - 1)
    def _():
        h = acc_ref[...] * inv_keep + bias_emb_ref[...]
        h_ref[...] = jnp.maximum(h, 0.0).astype(h_ref.dtype)


def cdae_decoder_kernel(h_ref, w_ref, b_ref, out_ref):
    """out = h @ W_dec + b_dec for one (batch block, item block)."""
    out = jnp.dot(h_ref[...], w_ref[...], preferred_element_type=jnp.float32)
    out_ref[...] = (out + b_ref[...]).astype(out_ref.dtype)


# ----------------------------------------------------------------------------
# Wrapper
# ----------------------------------------------------------------------------
def cdae_forward(batch_user, batch_user_R, params, noise_level, rng_key,
                 train=True):
    """Pallas-backed CDAE forward. Returns logits [B, item_count] (float32)."""
    B, I = batch_user_R.shape
    H = params["enc_w"].shape[1]

    # --- dropout (denoising corruption) mask in host JAX glue -----------------
    if train and float(noise_level) > 0.0:
        keep = jax.random.bernoulli(rng_key, 1.0 - float(noise_level), (B, I))
        x = batch_user_R * keep.astype(batch_user_R.dtype)  # 0/1 * binary R -> exact
        inv_keep = 1.0 / (1.0 - float(noise_level))
    else:
        x = batch_user_R
        inv_keep = 1.0

    # --- embedding gather (nn.Embedding lookup) stays in plain JAX ------------
    uemb = params["user_emb"][batch_user]                    # [B, H]
    bias_emb = uemb.astype(jnp.float32) + params["enc_b"].reshape(1, H)

    # --- padded / tiled shapes -------------------------------------------------
    Hp = _round_up(H, 128)                          # MXU-native hidden width
    bm = min(_round_up(B, 8), 128)                  # batch block (sublane multiple)
    Bp = _round_up(B, bm)
    item_blk = 512 if I > 512 else _round_up(I, 128)  # lane-dense item block
    Ip = _round_up(I, item_blk)

    f32 = jnp.float32
    bf16 = jnp.bfloat16

    x_p = jnp.zeros((Bp, Ip), bf16).at[:B, :I].set(x.astype(bf16))
    bias_emb_p = jnp.zeros((Bp, Hp), f32).at[:B, :H].set(bias_emb)
    enc_w_p = jnp.zeros((Ip, Hp), bf16).at[:I, :H].set(params["enc_w"].astype(bf16))
    dec_w_p = jnp.zeros((Hp, Ip), bf16).at[:H, :I].set(params["dec_w"].astype(bf16))
    dec_b_p = jnp.zeros((1, Ip), f32).at[:, :I].set(params["dec_b"].reshape(1, I))

    n_b = Bp // bm
    n_i = Ip // item_blk

    # --- encoder: reduce over item blocks into an h accumulator ---------------
    h = pl.pallas_call(
        functools.partial(cdae_encoder_kernel, float(inv_keep)),
        out_shape=jax.ShapeDtypeStruct((Bp, Hp), bf16),
        grid=(n_b, n_i),
        in_specs=[
            pl.BlockSpec((bm, item_blk), lambda i, k: (i, k)),   # x block
            pl.BlockSpec((item_blk, Hp), lambda i, k: (k, 0)),   # enc_w block
            pl.BlockSpec((bm, Hp), lambda i, k: (i, 0)),         # b_enc + user emb
        ],
        out_specs=pl.BlockSpec((bm, Hp), lambda i, k: (i, 0)),
        scratch_shapes=[pltpu.VMEM((bm, Hp), f32)],
        compiler_params=pltpu.CompilerParams(
            dimension_semantics=("parallel", "arbitrary")),
    )(x_p, enc_w_p, bias_emb_p)

    # --- decoder: tile the output item dim, both axes independent -------------
    out_p = pl.pallas_call(
        cdae_decoder_kernel,
        out_shape=jax.ShapeDtypeStruct((Bp, Ip), f32),
        grid=(n_b, n_i),
        in_specs=[
            pl.BlockSpec((bm, Hp), lambda i, j: (i, 0)),          # h block
            pl.BlockSpec((Hp, item_blk), lambda i, j: (0, j)),    # dec_w block
            pl.BlockSpec((1, item_blk), lambda i, j: (0, j)),     # dec_b block
        ],
        out_specs=pl.BlockSpec((bm, item_blk), lambda i, j: (i, j)),
        compiler_params=pltpu.CompilerParams(
            dimension_semantics=("parallel", "parallel")),
    )(h, dec_w_p, dec_b_p)

    return out_p[:B, :I]


# ----------------------------------------------------------------------------
# Param init (shapes match the PyTorch module)
# ----------------------------------------------------------------------------
def init_params(user_count, item_count, hidden_dim, key):
    k0, k1, k2, k3, k4 = jax.random.split(key, 5)
    # nn.Embedding weight init: normal(0, 0.01)
    user_emb = 0.01 * jax.random.normal(k0, (user_count, hidden_dim), jnp.float32)
    # nn.Linear(item_count -> hidden_dim): uniform(-1/sqrt(in), 1/sqrt(in))
    lim_e = 1.0 / (item_count ** 0.5)
    enc_w = jax.random.uniform(k1, (item_count, hidden_dim), jnp.float32,
                               minval=-lim_e, maxval=lim_e)
    enc_b = jax.random.uniform(k2, (hidden_dim,), jnp.float32,
                               minval=-lim_e, maxval=lim_e)
    # nn.Linear(hidden_dim -> item_count)
    lim_d = 1.0 / (hidden_dim ** 0.5)
    dec_w = jax.random.uniform(k3, (hidden_dim, item_count), jnp.float32,
                               minval=-lim_d, maxval=lim_d)
    dec_b = jax.random.uniform(k4, (item_count,), jnp.float32,
                               minval=-lim_d, maxval=lim_d)
    return dict(user_emb=user_emb, enc_w=enc_w, enc_b=enc_b,
                dec_w=dec_w, dec_b=dec_b)


if __name__ == "__main__":
    user_count = 8
    item_count = 256
    hidden_dim = 32
    noise_level = 0.5
    batch_size = 8

    key = jax.random.PRNGKey(0)
    kp, ku, kr, kd = jax.random.split(key, 4)

    params = init_params(user_count, item_count, hidden_dim, kp)

    # batch of users and their binary interaction rows
    batch_user = jax.random.randint(ku, (batch_size,), 0, user_count, jnp.int32)
    batch_user_R = (jax.random.uniform(kr, (batch_size, item_count))
                    < 0.1).astype(jnp.float32)

    out = cdae_forward(batch_user, batch_user_R, params, noise_level, rng_key=kd)
    out = jax.block_until_ready(out)

    assert out.shape == (batch_size, item_count)
    assert out.dtype == jnp.float32
    assert bool(jnp.all(jnp.isfinite(out)))
    print("KERNEL_OK")
</pallas_src>

<mosaic_0001>
module attributes {stable_mosaic.version = 11 : i64} {
  func.func @cdae_encoder_kernel(%arg0: i32, %arg1: i32, %arg2: memref<8x256xbf16, #tpu.memory_space<vmem>>, %arg3: memref<256x128xbf16, #tpu.memory_space<vmem>>, %arg4: memref<8x128xf32, #tpu.memory_space<vmem>>, %arg5: memref<8x128xbf16, #tpu.memory_space<vmem>>, %arg6: memref<8x128xf32, #tpu.memory_space<vmem>>) attributes {dimension_semantics = [#tpu.dimension_semantics<parallel>, #tpu.dimension_semantics<arbitrary>], iteration_bounds = array<i64: 1, 1>, scalar_prefetch = 0 : i64, scratch_operands = 1 : i64, tpu.core_type = #tpu.core_type<tc>, window_params = [{transform_indices = @transform_0, window_bounds = array<i64: 8, 256>}, {transform_indices = @transform_1, window_bounds = array<i64: 256, 128>}, {transform_indices = @transform_2, window_bounds = array<i64: 8, 128>}, {transform_indices = @transform_3, window_bounds = array<i64: 8, 128>}]} {
    %c0_i32 = arith.constant 0 : i32
    %0 = arith.cmpi eq, %arg1, %c0_i32 : i32
    %1 = arith.extui %0 : i1 to i32
    %c0_i32_0 = arith.constant 0 : i32
    %2 = arith.cmpi ne, %1, %c0_i32_0 : i32
    scf.if %2 {
      %cst_10 = arith.constant 0.000000e+00 : f32
      %12 = vector.broadcast %cst_10 : f32 to vector<8x128xf32>
      %c0_11 = arith.constant 0 : index
      %c0_12 = arith.constant 0 : index
      %13 = vector.load %arg6[%c0_11, %c0_12] : memref<8x128xf32, #tpu.memory_space<vmem>>, vector<8x128xf32>
      tpu.vector_store %arg6[%c0_11, %c0_12], %12 {strides = array<i32>} : memref<8x128xf32, #tpu.memory_space<vmem>>, vector<8x128xf32>,
    } else {
    }
    %c0 = arith.constant 0 : index
    %c0_1 = arith.constant 0 : index
    %3 = vector.load %arg6[%c0, %c0_1] : memref<8x128xf32, #tpu.memory_space<vmem>>, vector<8x128xf32>
    %c0_2 = arith.constant 0 : index
    %c0_3 = arith.constant 0 : index
    %4 = vector.load %arg2[%c0_2, %c0_3] : memref<8x256xbf16, #tpu.memory_space<vmem>>, vector<8x256xbf16>
    %c0_4 = arith.constant 0 : index
    %c0_5 = arith.constant 0 : index
    %5 = vector.load %arg3[%c0_4, %c0_5] : memref<256x128xbf16, #tpu.memory_space<vmem>>, vector<256x128xbf16>
    %cst = arith.constant dense<0.000000e+00> : vector<8x128xf32>
    %6 = tpu.matmul %4, %5, %cst {dimension_numbers = #tpu.dot_dimension_numbers<[1], [0], [0], [1], [0, 0, 1, 1], [], []>} : vector<8x256xbf16>, vector<256x128xbf16>, vector<8x128xf32> -> vector<8x128xf32>
    %7 = arith.addf %3, %6 : vector<8x128xf32>
    %c0_6 = arith.constant 0 : index
    %c0_7 = arith.constant 0 : index
    %8 = vector.load %arg6[%c0_6, %c0_7] : memref<8x128xf32, #tpu.memory_space<vmem>>, vector<8x128xf32>
    tpu.vector_store %arg6[%c0_6, %c0_7], %7 {strides = array<i32>} : memref<8x128xf32, #tpu.memory_space<vmem>>, vector<8x128xf32>,
    %c0_i32_8 = arith.constant 0 : i32
    %9 = arith.cmpi eq, %arg1, %c0_i32_8 : i32
    %10 = arith.extui %9 : i1 to i32
    %c0_i32_9 = arith.constant 0 : i32
    %11 = arith.cmpi ne, %10, %c0_i32_9 : i32
    scf.if %11 {
      %c0_10 = arith.constant 0 : index
      %c0_11 = arith.constant 0 : index
      %12 = vector.load %arg6[%c0_10, %c0_11] : memref<8x128xf32, #tpu.memory_space<vmem>>, vector<8x128xf32>
      %cst_12 = arith.constant 2.000000e+00 : f32
      %13 = vector.broadcast %cst_12 : f32 to vector<8x128xf32>
      %14 = arith.mulf %12, %13 : vector<8x128xf32>
      %c0_13 = arith.constant 0 : index
      %c0_14 = arith.constant 0 : index
      %15 = vector.load %arg4[%c0_13, %c0_14] : memref<8x128xf32, #tpu.memory_space<vmem>>, vector<8x128xf32>
      %16 = arith.addf %14, %15 : vector<8x128xf32>
      %cst_15 = arith.constant 0.000000e+00 : f32
      %17 = vector.broadcast %cst_15 : f32 to vector<8x128xf32>
      %18 = arith.maximumf %16, %17 : vector<8x128xf32>
      %19 = arith.truncf %18 : vector<8x128xf32> to vector<8x128xbf16>
      %c0_16 = arith.constant 0 : index
      %c0_17 = arith.constant 0 : index
      %20 = vector.load %arg5[%c0_16, %c0_17] : memref<8x128xbf16, #tpu.memory_space<vmem>>, vector<8x128xbf16>
      tpu.vector_store %arg5[%c0_16, %c0_17], %19 {strides = array<i32>} : memref<8x128xbf16, #tpu.memory_space<vmem>>, vector<8x128xbf16>,
    } else {
    }
    return
  }
  func.func @transform_0(%arg0: i32, %arg1: i32) -> (i32, i32) {
    %c0_i32 = arith.constant 0 : i32
    return %arg0, %arg1 : i32, i32
  }
  func.func @transform_1(%arg0: i32, %arg1: i32) -> (i32, i32) {
    %c0_i32 = arith.constant 0 : i32
    %c0_i32_0 = arith.constant 0 : i32
    return %arg1, %c0_i32 : i32, i32
  }
  func.func @transform_2(%arg0: i32, %arg1: i32) -> (i32, i32) {
    %c0_i32 = arith.constant 0 : i32
    %c0_i32_0 = arith.constant 0 : i32
    return %arg0, %c0_i32 : i32, i32
  }
  func.func @transform_3(%arg0: i32, %arg1: i32) -> (i32, i32) {
    %c0_i32 = arith.constant 0 : i32
    %c0_i32_0 = arith.constant 0 : i32
    return %arg0, %c0_i32 : i32, i32
  }
}

</mosaic_0001>

<llo_original>
// kernel: tpu_custom_call.1
$region0: #{tpu_custom_call.1}
  #allocation0 [shape = 'u32[]', space=smem, size = 0x4, offset = 0x4, fixed_abs, tag = 'smem constant byte address 0x4 - core index']
  #allocation1 [shape = 'u32[144,128]{1,0:T(1,128)}', space=vmem, size = 0x12000, scoped, tag = 'internal scratch']
  #allocation2 [shape = 'f32[8,128]{1,0:T(8,128)}', space=vmem, size = 0x1000, scoped, tag = 'scratch operand']
  %s0 = inlined_call_operand.hbm [shape: bf16[8,256], index: 0, kind: input, shape index: {}]
  %s1 = inlined_call_operand.hbm [shape: bf16[256,128], index: 1, kind: input, shape index: {}]
  %s2 = inlined_call_operand.hbm [shape: f32[8,128], index: 2, kind: input, shape index: {}]
  %s3 = inlined_call_operand.hbm [shape: bf16[8,128], index: 3, kind: output, shape index: {}]
  %s4 = sld [smem:[#allocation0]]
  $region42: #{tpu_custom_call.1} parent=0
    _
  %s6 = ssub.s32 1, %s4
  %s7 = scalar_select 0, %s6, %s4
  $region1: #{tpu_custom_call.1} parent=0
    #allocation3 [shape = 'u8[4096]{0}', space=vmem, size = 0x1000, scoped, tag = 'input window, operand 0, single buffered']
    #allocation4 [shape = 's32[1]{0}', space=sflag, size = 0x4, scoped, tag = 'scoped memory for tpu_custom_call.1']
    #allocation5 [shape = 's32[1]{0}', space=sflag, size = 0x4, scoped, tag = 'scoped memory for tpu_custom_call.1']
    #allocation6 [shape = 'u8[65536]{0}', space=vmem, size = 0x10000, scoped, tag = 'input window, operand 1, single buffered']
    #allocation7 [shape = 's32[1]{0}', space=sflag, size = 0x4, scoped, tag = 'scoped memory for tpu_custom_call.1']
    #allocation8 [shape = 'u8[4096]{0}', space=vmem, size = 0x1000, scoped, tag = 'input window, operand 2, single buffered']
    #allocation9 [shape = 'u8[2048]{0}', space=vmem, size = 0x800, scoped, tag = 'output window, operand 0, single buffered']
    %8 = vsyncpa [#allocation4], 0
    %9 = vsyncpa [#allocation7], 0
    %10 = vsyncpa [#allocation5], 0
    // Predicated region
    $region2: #{tpu_custom_call.1} parent=1 // pred_check
      _
    $region3: #{tpu_custom_call.1} parent=1 // pred_check_branch
      %12 = sbr.rel (0) target = $region5
    $region4: #{tpu_custom_call.1} parent=1 // pred_region
      %s14 = ssub.s32 128, 128
      %15 = vsyncadd [#allocation4], %s14
      %s17 = sshll.u32 [#allocation3], 4
      %s18 = int_to_ptr.vmem [resolvable:$true] %s17
      %20 = dma.hbm_to_vmem [thread:$0]  %s0, 128, %s18, [#allocation4]
    $region5: #{tpu_custom_call.1} parent=1 // pred_fallthru
      _
    // Predicated region
    $region6: #{tpu_custom_call.1} parent=1 // pred_check
      _
    $region7: #{tpu_custom_call.1} parent=1 // pred_check_branch
      %22 = sbr.rel (0) target = $region9
    $region8: #{tpu_custom_call.1} parent=1 // pred_region
      %s24 = ssub.s32 2048, 2048
      %25 = vsyncadd [#allocation7], %s24
      %s26 = sshll.u32 [#allocation6], 4
      %s27 = int_to_ptr.vmem [resolvable:$true] %s26
      %32 = dma.hbm_to_vmem [thread:$0]  %s1, 2048, %s27, [#allocation7], 64, 64, 4
    $region9: #{tpu_custom_call.1} parent=1 // pred_fallthru
      _
    // Predicated region
    $region10: #{tpu_custom_call.1} parent=1 // pred_check
      _
    $region11: #{tpu_custom_call.1} parent=1 // pred_check_branch
      %34 = sbr.rel (0) target = $region13
    $region12: #{tpu_custom_call.1} parent=1 // pred_region
      %s36 = ssub.s32 128, 128
      %37 = vsyncadd [#allocation7], %s36
      %s39 = sshll.u32 [#allocation8], 4
      %s40 = int_to_ptr.vmem [resolvable:$true] %s39
      %42 = dma.hbm_to_vmem [thread:$0]  %s2, 128, %s40, [#allocation7]
    $region13: #{tpu_custom_call.1} parent=1 // pred_fallthru
      _
    // Predicated region
    $region14: #{tpu_custom_call.1} parent=1 // pred_check
      _
    $region15: #{tpu_custom_call.1} parent=1 // pred_check_branch
      %44 = sbr.rel (0) target = $region17
    $region16: #{tpu_custom_call.1} parent=1 // pred_region
      %45 = dma.done [#allocation4], 128
    $region17: #{tpu_custom_call.1} parent=1 // pred_fallthru
      _
    // Predicated region
    $region18: #{tpu_custom_call.1} parent=1 // pred_check
      _
    $region19: #{tpu_custom_call.1} parent=1 // pred_check_branch
      %47 = sbr.rel (0) target = $region21
    $region20: #{tpu_custom_call.1} parent=1 // pred_region
      %48 = dma.done [#allocation7], 2048
    $region21: #{tpu_custom_call.1} parent=1 // pred_fallthru
      _
    // Predicated region
    $region22: #{tpu_custom_call.1} parent=1 // pred_check
      _
    $region23: #{tpu_custom_call.1} parent=1 // pred_check_branch
      %50 = sbr.rel (0) target = $region25
    $region24: #{tpu_custom_call.1} parent=1 // pred_region
      %51 = dma.done [#allocation7], 128
    $region25: #{tpu_custom_call.1} parent=1 // pred_fallthru
      _
    %p53 = scmp.eq.s32.totalorder 0, 0
    // Predicated region
    $region26: #{tpu_custom_call.1} parent=1 // pred_check
      %p54 = pneg %p53
    $region27: #{tpu_custom_call.1} parent=1 // pred_check_branch
      %56 = sbr.rel (%p54) target = $region29
    $region28: #{tpu_custom_call.1} parent=1 // pred_region
      %57 = vst [vmem:[#allocation2] sm:$0xff] 0.0
    $region29: #{tpu_custom_call.1} parent=1 // pred_fallthru
      _
    %v58 = vld [vmem:[#allocation2] sm:$0xff]
    %v59 = vld [vmem:[#allocation3] sm:$0xff]
    %v60 = vld [vmem:[#allocation6] sm:$0xf]
    %v61 = vld [vmem:[#allocation6 + $0x4] sm:$0xf]
    %v62 = vld [vmem:[#allocation6 + $0x8] sm:$0xf]
    %v63 = vld [vmem:[#allocation6 + $0xc] sm:$0xf]
    %v64 = vld [vmem:[#allocation6 + $0x10] sm:$0xf]
    %v65 = vld [vmem:[#allocation6 + $0x14] sm:$0xf]
    %v66 = vld [vmem:[#allocation6 + $0x18] sm:$0xf]
    %v67 = vld [vmem:[#allocation6 + $0x1c] sm:$0xf]
    %v68 = vld [vmem:[#allocation6 + $0x20] sm:$0xf]
    %v69 = vld [vmem:[#allocation6 + $0x24] sm:$0xf]
    %v70 = vld [vmem:[#allocation6 + $0x28] sm:$0xf]
    %v71 = vld [vmem:[#allocation6 + $0x2c] sm:$0xf]
    %v72 = vld [vmem:[#allocation6 + $0x30] sm:$0xf]
    %v73 = vld [vmem:[#allocation6 + $0x34] sm:$0xf]
    %v74 = vld [vmem:[#allocation6 + $0x38] sm:$0xf]
    %v75 = vld [vmem:[#allocation6 + $0x3c] sm:$0xf]
    %v76 = vld [vmem:[#allocation6 + $0x40] sm:$0xf]
    %v77 = vld [vmem:[#allocation6 + $0x44] sm:$0xf]
    %v78 = vld [vmem:[#allocation6 + $0x48] sm:$0xf]
    %v79 = vld [vmem:[#allocation6 + $0x4c] sm:$0xf]
    %v80 = vld [vmem:[#allocation6 + $0x50] sm:$0xf]
    %v81 = vld [vmem:[#allocation6 + $0x54] sm:$0xf]
    %v82 = vld [vmem:[#allocation6 + $0x58] sm:$0xf]
    %v83 = vld [vmem:[#allocation6 + $0x5c] sm:$0xf]
    %v84 = vld [vmem:[#allocation6 + $0x60] sm:$0xf]
    %v85 = vld [vmem:[#allocation6 + $0x64] sm:$0xf]
    %v86 = vld [vmem:[#allocation6 + $0x68] sm:$0xf]
    %v87 = vld [vmem:[#allocation6 + $0x6c] sm:$0xf]
    %v88 = vld [vmem:[#allocation6 + $0x70] sm:$0xf]
    %v89 = vld [vmem:[#allocation6 + $0x74] sm:$0xf]
    %v90 = vld [vmem:[#allocation6 + $0x78] sm:$0xf]
    %v91 = vld [vmem:[#allocation6 + $0x7c] sm:$0xf]
    %v93 = vunpack.c.l.b16 %v59
    %v94 = vunpack.c.h.b16 %v59
    %v95 = vpack.c.b16 %v93, %v93
    %v96 = vpack.c.b16 %v94, %v94
    %v131 = vunpack.c.l.b16 %v60
    %v132 = vunpack.c.l.b16 %v61
    %v133 = vunpack.c.l.b16 %v62
    %v134 = vunpack.c.l.b16 %v63
    %v135 = vunpack.c.l.b16 %v64
    %v136 = vunpack.c.l.b16 %v65
    %v137 = vunpack.c.l.b16 %v66
    %v138 = vunpack.c.l.b16 %v67
    %v139 = vunpack.c.l.b16 %v68
    %v140 = vunpack.c.l.b16 %v69
    %v141 = vunpack.c.l.b16 %v70
    %v142 = vunpack.c.l.b16 %v71
    %v143 = vunpack.c.l.b16 %v72
    %v144 = vunpack.c.l.b16 %v73
    %v145 = vunpack.c.l.b16 %v74
    %v146 = vunpack.c.l.b16 %v75
    %v147 = vunpack.c.l.b16 %v76
    %v148 = vunpack.c.l.b16 %v77
    %v149 = vunpack.c.l.b16 %v78
    %v150 = vunpack.c.l.b16 %v79
    %v151 = vunpack.c.l.b16 %v80
    %v152 = vunpack.c.l.b16 %v81
    %v153 = vunpack.c.l.b16 %v82
    %v154 = vunpack.c.l.b16 %v83
    %v155 = vunpack.c.l.b16 %v84
    %v156 = vunpack.c.l.b16 %v85
    %v157 = vunpack.c.l.b16 %v86
    %v158 = vunpack.c.l.b16 %v87
    %v159 = vunpack.c.l.b16 %v88
    %v160 = vunpack.c.l.b16 %v89
    %v161 = vunpack.c.l.b16 %v90
    %v162 = vunpack.c.l.b16 %v91
    %v163 = vpack.c.b16 %v132, %v131
    %v164 = vpack.c.b16 %v134, %v133
    %v165 = vpack.c.b16 %v136, %v135
    %v166 = vpack.c.b16 %v138, %v137
    %v167 = vpack.c.b16 %v140, %v139
    %v168 = vpack.c.b16 %v142, %v141
    %v169 = vpack.c.b16 %v144, %v143
    %v170 = vpack.c.b16 %v146, %v145
    %v171 = vpack.c.b16 %v148, %v147
    %v172 = vpack.c.b16 %v150, %v149
    %v173 = vpack.c.b16 %v152, %v151
    %v174 = vpack.c.b16 %v154, %v153
    %v175 = vpack.c.b16 %v156, %v155
    %v176 = vpack.c.b16 %v158, %v157
    %v177 = vpack.c.b16 %v160, %v159
    %v178 = vpack.c.b16 %v162, %v161
    %195 = vmatprep.subr.bf16.mxu0 0
    %196 = vmatpush1.bf16.msra.mxu0 %v170
    %197 = vmatprep.subr.bf16.mxu0 0
    %198 = vmatpush1.bf16.msra.mxu0 %v169
    %199 = vmatprep.subr.bf16.mxu0 0
    %200 = vmatpush1.bf16.msra.mxu0 %v168
    %201 = vmatprep.subr.bf16.mxu0 0
    %202 = vmatpush1.bf16.msra.mxu0 %v167
    %203 = vmatprep.subr.bf16.mxu0 0
    %204 = vmatpush1.bf16.msra.mxu0 %v166
    %205 = vmatprep.subr.bf16.mxu0 0
    %206 = vmatpush1.bf16.msra.mxu0 %v165
    %207 = vmatprep.subr.bf16.mxu0 0
    %208 = vmatpush1.bf16.msra.mxu0 %v164
    %209 = vmatprep.subr.bf16.mxu0 0
    %210 = vmatpush1.bf16.msra.mxu0 %v163
    %211 = vmatprep.subr.bf16.mxu0 0
    %212 = vmatpush2.bf16.msra.mxu0 %v178
    %213 = vmatprep.subr.bf16.mxu0 0
    %214 = vmatpush2.bf16.msra.mxu0 %v177
    %215 = vmatprep.subr.bf16.mxu0 0
    %216 = vmatpush2.bf16.msra.mxu0 %v176
    %217 = vmatprep.subr.bf16.mxu0 0
    %218 = vmatpush2.bf16.msra.mxu0 %v175
    %219 = vmatprep.subr.bf16.mxu0 0
    %220 = vmatpush2.bf16.msra.mxu0 %v174
    %221 = vmatprep.subr.bf16.mxu0 0
    %222 = vmatpush2.bf16.msra.mxu0 %v173
    %223 = vmatprep.subr.bf16.mxu0 0
    %224 = vmatpush2.bf16.msra.mxu0 %v172
    %225 = vmatprep.subr.bf16.mxu0 0
    %226 = vmatpush2.bf16.msra.mxu0 %v171
    %227 = vmatprep.mubr.bf16.mxu0 %v96
    %228 = vmatmul.mubr.bf16.gmra.mxu0 %v95
    %v229 = vpop.f32.mrf.mxu0
    %v230 = vadd.f32 0.0, %v229
    %v231 = vpop.f32.mrf.mxu0
    %v232 = vpop.f32.mrf.mxu0
    %v233 = vpop.f32.mrf.mxu0
    %234 = vdwg.mxu0
    %v235 = vadd.f32 %v58, %v230
    %236 = vst [vmem:[#allocation2] sm:$0xff] %v235
    // Predicated region
    $region30: #{tpu_custom_call.1} parent=1 // pred_check
      %p237 = pneg %p53
    $region31: #{tpu_custom_call.1} parent=1 // pred_check_branch
      %239 = sbr.rel (%p237) target = $region33
    $region32: #{tpu_custom_call.1} parent=1 // pred_region
      %v240 = vld [vmem:[#allocation2] sm:$0xff]
      %v241 = vmul.f32 %v240, 2.0
      %v242 = vld [vmem:[#allocation8] sm:$0xff]
      %v243 = vadd.f32 %v241, %v242
      %v244 = vmax.f32 %v243, 0.0
      %v245 = vpack.c.bf16 %v244, %v244
      %246 = vst [vmem:[#allocation9] sm:$0xf] %v245
    $region33: #{tpu_custom_call.1} parent=1 // pred_fallthru
      _
    // Predicated region
    $region34: #{tpu_custom_call.1} parent=1 // pred_check
      _
    $region35: #{tpu_custom_call.1} parent=1 // pred_check_branch
      %248 = sbr.rel (0) target = $region37
    $region36: #{tpu_custom_call.1} parent=1 // pred_region
      %s250 = ssub.s32 64, 64
      %251 = vsyncadd [#allocation5], %s250
      %s253 = sshll.u32 [#allocation9], 4
      %s254 = int_to_ptr.vmem [resolvable:$true] %s253
      %256 = dma.vmem_to_hbm [thread:$0]  %s254, 64, %s3, [#allocation5]
    $region37: #{tpu_custom_call.1} parent=1 // pred_fallthru
      _
    // Predicated region
    $region38: #{tpu_custom_call.1} parent=1 // pred_check
      _
    $region39: #{tpu_custom_call.1} parent=1 // pred_check_branch
      %258 = sbr.rel (0) target = $region41
    $region40: #{tpu_custom_call.1} parent=1 // pred_region
      %259 = dma.done [#allocation5], 64
    $region41: #{tpu_custom_call.1} parent=1 // pred_fallthru
      _
    %260 = vsyncpa [#allocation4], 1
    %261 = vsyncpa [#allocation7], 1
    %262 = vsyncpa [#allocation5], 1

</llo_original>
